<compile_context>
chip_gen: v5e
topology: v5e:2x2
jax: 0.10.0
libtpu: 0.0.40
codegen_flags: <defaults>
</compile_context>

<pallas_src>
import jax
import jax.numpy as jnp
from jax.experimental import pallas as pl
from jax.experimental.pallas import tpu as pltpu


_LANE_CANDIDATES = (8192, 4096, 2048, 1024, 512, 256, 128)
_TARGET_BLOCK_BYTES = 4 * 1024 * 1024     # ~4 MiB/block; x4 pipelined bufs = 16 MiB VMEM
_MIN_KERNEL_BYTES = 1 * 1024 * 1024       # below this, plain XLA elementwise wins
_VMEM_LIMIT_BYTES = 32 * 1024 * 1024      # explicit; >= 2x the pipelined footprint


def _round_up(v, m):
    return -(-v // m) * m


def _round_down(v, m):
    return (v // m) * m


def _const_scale_kernel(scale, bias):
    """Kernel body with scale/bias baked in as compile-time constants."""
    def kernel(x_ref, o_ref):
        # Pure VPU elementwise; cast back so promoted dtypes (e.g. int inputs
        # with python-float scale/bias) still store into o_ref's dtype.
        o_ref[...] = (x_ref[...] * scale + bias).astype(o_ref.dtype)
    return kernel


def _choose_tiling(total, itemsize):
    """Pick (lane, rows, row_tile) for a lane-dense 2D slab, or None to fall back."""
    if total == 0 or total % 128 != 0:
        return None
    sublane = max(8, 8 * (4 // max(1, itemsize)))     # f32: 8, bf16: 16, int8/fp8: 32

    # Widest lane (multiple of 128 dividing total) keeping rows >= sublane so
    # (sublane,128) tiles are fully populated and vst stays unmasked.
    lane = next((w for w in _LANE_CANDIDATES
                 if total % w == 0 and total // w >= sublane), None)
    if lane is None:
        # Tiny array: widest dividing lane, whole array as one full-extent block
        # (legal because block dims == array dims even when rows < sublane).
        lane = next((w for w in _LANE_CANDIDATES if total % w == 0), None)
        if lane is None:
            return None
        rows = total // lane
        return lane, rows, rows

    rows = total // lane
    row_bytes = lane * itemsize

    # Largest row-tile that is a multiple of the sublane, fits the per-block
    # byte target, and does not exceed the sublane-aligned row count.
    cap = max(sublane, _round_down(_TARGET_BLOCK_BYTES // row_bytes, sublane))
    max_tile = _round_down(rows, sublane)             # >= sublane by construction
    row_tile = min(cap, max_tile)

    # Keep both v7x TensorCores busy: with real work, ensure >= 2 programs on
    # the ("parallel",) grid axis.
    if pl.cdiv(rows, row_tile) < 2 and rows >= 2 * sublane \
            and total * itemsize >= _MIN_KERNEL_BYTES:
        row_tile = min(max_tile, max(sublane, _round_up(pl.cdiv(rows, 2), sublane)))

    return lane, rows, row_tile


def const_scale(x, scale, bias, *, force_kernel=False, donate_input=False):
    """Elementwise y = x * scale + bias via a Pallas TPU kernel.

    x: any shape (e.g. NCHW). scale/bias: python scalars (module constants).
    force_kernel: bypass the small-size bailout (testing/benchmarking).
    donate_input: alias the output onto x's HBM buffer (only a win if the
        caller actually donates x at the jit boundary).
    """
    # Output dtype follows the same promotion rules as the reference op.
    out_dtype = jax.eval_shape(lambda a: a * scale + bias, x).dtype
    total = x.size
    itemsize = jnp.dtype(x.dtype).itemsize

    if (not force_kernel) and total * itemsize < _MIN_KERNEL_BYTES:
        # Tiny tensors: pallas_call launch + pipeline fill/drain dominates and
        # XLA fuses this elementwise op into neighbors for free.
        return x * scale + bias

    tiling = _choose_tiling(total, itemsize)
    if tiling is None:
        # Element count not a clean multiple of 128: padding/slicing would add
        # full extra HBM copies, so let XLA handle the (fusable) elementwise op.
        return x * scale + bias

    lane, rows, row_tile = tiling
    # Row-major reshape of a default-layout array lowers to a bitcast (no copy).
    x2d = x.reshape(rows, lane)
    grid = (pl.cdiv(rows, row_tile),)

    alias = {}
    if donate_input and out_dtype == x.dtype:
        # Opt-in: without donation at the jit boundary XLA inserts a defensive
        # copy of x, which would add HBM traffic instead of saving footprint.
        alias = {0: 0}

    out2d = pl.pallas_call(
        _const_scale_kernel(scale, bias),
        out_shape=jax.ShapeDtypeStruct((rows, lane), out_dtype),
        grid_spec=pltpu.PrefetchScalarGridSpec(
            num_scalar_prefetch=0,
            grid=grid,
            in_specs=[pl.BlockSpec((row_tile, lane), lambda i: (i, 0))],
            out_specs=pl.BlockSpec((row_tile, lane), lambda i: (i, 0)),
        ),
        compiler_params=pltpu.CompilerParams(
            dimension_semantics=("parallel",),
            vmem_limit_bytes=_VMEM_LIMIT_BYTES,
        ),
        input_output_aliases=alias,
    )(x2d)

    return out2d.reshape(x.shape)


if __name__ == "__main__":
    # Module "parameters": scale and bias are plain constants at construction.
    scale = 2.5
    bias = -0.75

    key = jax.random.PRNGKey(0)
    k1, k2, k3 = jax.random.split(key, 3)

    # 1) Small, module-consistent NCHW shape, forced through the kernel path.
    x_small = jax.random.normal(k1, (2, 4, 16, 16), dtype=jnp.float32)
    y_small = const_scale(x_small, scale, bias, force_kernel=True)
    jax.block_until_ready(y_small)
    assert y_small.shape == x_small.shape and y_small.dtype == x_small.dtype
    assert jnp.allclose(y_small, x_small * scale + bias, atol=1e-6, rtol=1e-6)

    # 2) ImageNet-like 8x3x224x224: lane=8192, rows=147 -> cdiv grid with a
    #    partial last block and >=2 "parallel" programs (both v7x TCs).
    x_big = jax.random.normal(k2, (8, 3, 224, 224), dtype=jnp.float32)
    y_big = const_scale(x_big, scale, bias)
    jax.block_until_ready(y_big)
    assert y_big.shape == x_big.shape and y_big.dtype == x_big.dtype
    assert jnp.allclose(y_big, x_big * scale + bias, atol=1e-6, rtol=1e-6)

    # 3) bf16 input exercising sublane=16 tiling and the >=2-program split.
    x_bf16 = jax.random.normal(k3, (8, 16, 64, 128), dtype=jnp.bfloat16)
    y_bf16 = const_scale(x_bf16, scale, bias)
    jax.block_until_ready(y_bf16)
    assert y_bf16.shape == x_bf16.shape and y_bf16.dtype == x_bf16.dtype
    assert jnp.allclose(y_bf16.astype(jnp.float32),
                        (x_bf16 * scale + bias).astype(jnp.float32),
                        atol=1e-2, rtol=1e-2)

    # 4) Small tensor through the bailout path (XLA elementwise, no kernel).
    x_tiny = x_small + 1.0
    y_tiny = const_scale(x_tiny, scale, bias)
    jax.block_until_ready(y_tiny)
    assert jnp.allclose(y_tiny, x_tiny * scale + bias, atol=1e-6, rtol=1e-6)

    print("KERNEL_OK")
</pallas_src>

<mosaic_0001>
module attributes {stable_mosaic.version = 11 : i64} {
  func.func @kernel(%arg0: i32, %arg1: memref<8x256xf32, #tpu.memory_space<vmem>>, %arg2: memref<8x256xf32, #tpu.memory_space<vmem>>) attributes {dimension_semantics = [#tpu.dimension_semantics<parallel>], iteration_bounds = array<i64: 1>, scalar_prefetch = 0 : i64, scratch_operands = 0 : i64, tpu.core_type = #tpu.core_type<tc>, window_params = [{transform_indices = @transform_0, window_bounds = array<i64: 8, 256>}, {transform_indices = @transform_1, window_bounds = array<i64: 8, 256>}]} {
    %c0 = arith.constant 0 : index
    %c0_0 = arith.constant 0 : index
    %0 = vector.load %arg1[%c0, %c0_0] : memref<8x256xf32, #tpu.memory_space<vmem>>, vector<8x256xf32>
    %cst = arith.constant 2.500000e+00 : f32
    %1 = vector.broadcast %cst : f32 to vector<8x256xf32>
    %2 = arith.mulf %0, %1 : vector<8x256xf32>
    %cst_1 = arith.constant -7.500000e-01 : f32
    %3 = vector.broadcast %cst_1 : f32 to vector<8x256xf32>
    %4 = arith.addf %2, %3 : vector<8x256xf32>
    %c0_2 = arith.constant 0 : index
    %c0_3 = arith.constant 0 : index
    %5 = vector.load %arg2[%c0_2, %c0_3] : memref<8x256xf32, #tpu.memory_space<vmem>>, vector<8x256xf32>
    tpu.vector_store %arg2[%c0_2, %c0_3], %4 {strides = array<i32>} : memref<8x256xf32, #tpu.memory_space<vmem>>, vector<8x256xf32>,
    return
  }
  func.func @transform_0(%arg0: i32) -> (i32, i32) {
    %c0_i32 = arith.constant 0 : i32
    %c0_i32_0 = arith.constant 0 : i32
    return %arg0, %c0_i32 : i32, i32
  }
  func.func @transform_1(%arg0: i32) -> (i32, i32) {
    %c0_i32 = arith.constant 0 : i32
    %c0_i32_0 = arith.constant 0 : i32
    return %arg0, %c0_i32 : i32, i32
  }
}

</mosaic_0001>

<llo_original>
// kernel: tpu_custom_call.1
$region0: #{tpu_custom_call.1}
  #allocation0 [shape = 'u32[]', space=smem, size = 0x4, offset = 0x4, fixed_abs, tag = 'smem constant byte address 0x4 - core index']
  #allocation1 [shape = 'u32[72,128]{1,0:T(1,128)}', space=vmem, size = 0x9000, scoped, tag = 'internal scratch']
  %s0 = inlined_call_operand.hbm [shape: f32[8,256], index: 0, kind: input, shape index: {}]
  %s1 = inlined_call_operand.hbm [shape: f32[8,256], index: 1, kind: output, shape index: {}]
  %s2 = sld [smem:[#allocation0]]
  $region18: #{tpu_custom_call.1} parent=0
    _
  %s4 = ssub.s32 1, %s2
  %s5 = scalar_select 0, %s4, %s2
  $region1: #{tpu_custom_call.1} parent=0
    #allocation2 [shape = 'u8[8192]{0}', space=vmem, size = 0x2000, scoped, tag = 'input window, operand 0, single buffered']
    #allocation3 [shape = 's32[1]{0}', space=sflag, size = 0x4, scoped, tag = 'scoped memory for tpu_custom_call.1']
    #allocation4 [shape = 's32[1]{0}', space=sflag, size = 0x4, scoped, tag = 'scoped memory for tpu_custom_call.1']
    #allocation5 [shape = 'u8[8192]{0}', space=vmem, size = 0x2000, scoped, tag = 'output window, operand 0, single buffered']
    %6 = vsyncpa [#allocation3], 0
    %7 = vsyncpa [#allocation4], 0
    // Predicated region
    $region2: #{tpu_custom_call.1} parent=1 // pred_check
      _
    $region3: #{tpu_custom_call.1} parent=1 // pred_check_branch
      %9 = sbr.rel (0) target = $region5
    $region4: #{tpu_custom_call.1} parent=1 // pred_region
      %11 = vsyncadd [#allocation3], 0
      %s13 = sshll.u32 %s0, 4
      %s14 = int_to_ptr.hbm [resolvable:$true] %s13
      %s15 = sshll.u32 [#allocation2], 4
      %s16 = int_to_ptr.vmem [resolvable:$true] %s15
      %18 = dma.hbm_to_vmem [thread:$0]  %s14, 256, %s16, [#allocation3]
    $region5: #{tpu_custom_call.1} parent=1 // pred_fallthru
      _
    // Predicated region
    $region6: #{tpu_custom_call.1} parent=1 // pred_check
      _
    $region7: #{tpu_custom_call.1} parent=1 // pred_check_branch
      %20 = sbr.rel (0) target = $region9
    $region8: #{tpu_custom_call.1} parent=1 // pred_region
      %22 = dma.done [#allocation3], 256
    $region9: #{tpu_custom_call.1} parent=1 // pred_fallthru
      _
    %v23 = vld [vmem:[#allocation2] sm:$0xff]
    %v24 = vld [vmem:[#allocation2 + $0x8] sm:$0xff]
    %v25 = vmul.f32 %v23, 2.5
    %v26 = vmul.f32 %v24, 2.5
    %v27 = vadd.f32 %v25, -0.75
    %v28 = vadd.f32 %v26, -0.75
    %29 = vst [vmem:[#allocation5] sm:$0xff] %v27
    %30 = vst [vmem:[#allocation5 + $0x8] sm:$0xff] %v28
    // Predicated region
    $region10: #{tpu_custom_call.1} parent=1 // pred_check
      _
    $region11: #{tpu_custom_call.1} parent=1 // pred_check_branch
      %32 = sbr.rel (0) target = $region13
    $region12: #{tpu_custom_call.1} parent=1 // pred_region
      %34 = vsyncadd [#allocation4], 0
      %s36 = sshll.u32 [#allocation5], 4
      %s37 = int_to_ptr.vmem [resolvable:$true] %s36
      %s38 = sshll.u32 %s1, 4
      %s39 = int_to_ptr.hbm [resolvable:$true] %s38
      %41 = dma.vmem_to_hbm [thread:$0]  %s37, 256, %s39, [#allocation4]
    $region13: #{tpu_custom_call.1} parent=1 // pred_fallthru
      _
    // Predicated region
    $region14: #{tpu_custom_call.1} parent=1 // pred_check
      _
    $region15: #{tpu_custom_call.1} parent=1 // pred_check_branch
      %43 = sbr.rel (0) target = $region17
    $region16: #{tpu_custom_call.1} parent=1 // pred_region
      %45 = dma.done [#allocation4], 256
    $region17: #{tpu_custom_call.1} parent=1 // pred_fallthru
      _
    %46 = vsyncpa [#allocation3], 1
    %47 = vsyncpa [#allocation4], 1

</llo_original>
